<compile_context>
chip_gen: v5e
topology: v5e:2x2
jax: 0.10.0
libtpu: 0.0.40
codegen_flags: <defaults>
</compile_context>

<pallas_src>
import functools

import jax
import jax.numpy as jnp
import numpy as np
from jax import lax
from jax.experimental import pallas as pl
from jax.experimental.pallas import tpu as pltpu

# ---------------- model hyper-parameters (small, consistent with module) -----
DIM = 64          # C, input channel dim
IN_DIM = 32       # per-head value dim
NUM_HEADS = 2
B = 2             # batch
N = 8             # sequence length
EPS = 1e-5        # LayerNorm eps (PyTorch default)
QK = 32           # q/k per-head dims are hard-coded to 32 in DeAttention
D_HEAD_QKV = IN_DIM + 64                    # per-head qkv width (96)
QKV_OUT = NUM_HEADS * D_HEAD_QKV            # Linear output width (192)
OUT_C = NUM_HEADS * IN_DIM                  # output channel dim (64)
SCALE = float((DIM // NUM_HEADS) ** -0.5)   # qk_scale default

LANE = 128
PAD_QKV = 3 * LANE          # padded qkv width: q @ [0,64), k @ [128,192), v @ [256,320)
OUT_PAD = LANE              # kernel output width (lane-dense store), sliced to 64 outside
NEG_INF = -1e30             # finite mask value (avoid inf-inf NaN in max-subtract)


def _detoken_kernel(x_ref, w_ref, bias_ref, out_ref, *, batch, seq):
    """Single grid step: whole (B*N, C) problem resident in VMEM."""
    bn = batch * seq
    x = x_ref[...].astype(jnp.float32)                       # (B*N, C)

    # ---- LayerNorm(dim), single-pass stats (independent reduces) -----------
    inv_c = 1.0 / x.shape[-1]
    s1 = jnp.sum(x, axis=-1, keepdims=True)
    s2 = jnp.sum(x * x, axis=-1, keepdims=True)
    mean = s1 * inv_c
    var = s2 * inv_c - mean * mean
    xn = (x - mean) * lax.rsqrt(var + EPS)

    # ---- qkv projection (gamma folded into W, beta folded into bias, qk
    #      scale folded into the q columns). One (B*N,64)@(64,384) MXU push.
    qkv = (jnp.dot(xn, w_ref[...], preferred_element_type=jnp.float32)
           + bias_ref[...])                                   # (B*N, 384)

    # ---- block-diagonal additive mask (batched-over-B attention) -----------
    # Built once with iota (int32 iota -> f32; +0.5 keeps the floor robust).
    inv_seq = 1.0 / seq
    r = lax.broadcasted_iota(jnp.int32, (bn, bn), 0).astype(jnp.float32)
    c = lax.broadcasted_iota(jnp.int32, (bn, bn), 1).astype(jnp.float32)
    row_b = jnp.floor((r + 0.5) * inv_seq)
    col_b = jnp.floor((c + 0.5) * inv_seq)
    mask = jnp.where(row_b == col_b, 0.0, NEG_INF).astype(jnp.float32)

    # ---- per-head attention, batched over B (2-iteration head loop) --------
    head_outs = []
    for h in range(NUM_HEADS):
        q = qkv[:, h * QK:(h + 1) * QK]                              # (B*N,32), pre-scaled
        k = qkv[:, LANE + h * QK: LANE + (h + 1) * QK]               # (B*N,32)
        v = qkv[:, 2 * LANE + h * IN_DIM: 2 * LANE + (h + 1) * IN_DIM]  # (B*N,32)

        # contract last dims -> no explicit k transpose materialized
        s = lax.dot_general(q, k, (((1,), (1,)), ((), ())),
                            preferred_element_type=jnp.float32)      # (B*N,B*N)
        s = s + mask
        # numerically stable softmax over last dim
        s = s - jnp.max(s, axis=-1, keepdims=True)
        p = jnp.exp(s)
        p = p * pl.reciprocal(jnp.sum(p, axis=-1, keepdims=True), approx=True)
        # attn_drop is identity (p=0.0 / eval mode)

        head_outs.append(jnp.dot(p, v, preferred_element_type=jnp.float32))

    # single concat -> (B*N, 128): [h0 | h1 | zero pad]
    attn_out = jnp.concatenate(
        head_outs + [jnp.zeros((bn, OUT_PAD - OUT_C), jnp.float32)], axis=-1)

    # residual: v tile is [v_h0 | v_h1 | 0...] == padded output layout already
    v_tile = qkv[:, 2 * LANE: 2 * LANE + OUT_PAD]                     # (B*N, 128)
    out_ref[...] = (v_tile + attn_out).astype(out_ref.dtype)          # dense 128-lane store


def detoken_transformer(x, gamma, beta, wqkv_t):
    """x: (B, N, DIM) -> (B, N, NUM_HEADS*IN_DIM). wqkv_t is (DIM, QKV_OUT)
    with the original per-head [q|k|v] column ordering (PyTorch weight.T)."""
    Bb, Nn, Cc = x.shape
    assert Cc == DIM

    # ---- trace-time constant weight prep (free relative to the kernel) -----
    # reorder columns to [q_h0|q_h1 | k_h0|k_h1 | v_h0|v_h1]
    perm = np.concatenate(
        [np.arange(h * D_HEAD_QKV, h * D_HEAD_QKV + QK)
         for h in range(NUM_HEADS)]
        + [np.arange(h * D_HEAD_QKV + QK, h * D_HEAD_QKV + 2 * QK)
           for h in range(NUM_HEADS)]
        + [np.arange(h * D_HEAD_QKV + 2 * QK, (h + 1) * D_HEAD_QKV)
           for h in range(NUM_HEADS)])
    w_r = wqkv_t[:, perm].astype(jnp.float32)                 # (C, 192)

    # fold LayerNorm affine: (xn*gamma+beta) @ W == xn @ (gamma*W) + beta@W
    g = gamma.reshape(-1).astype(jnp.float32)                 # (C,)
    bt = beta.reshape(1, -1).astype(jnp.float32)              # (1, C)
    w_eff = g[:, None] * w_r                                  # (C, 192)
    bias_eff = bt @ w_r                                       # (1, 192)

    # fold the qk scale into the q columns
    col_scale = jnp.concatenate([
        jnp.full((NUM_HEADS * QK,), SCALE, jnp.float32),
        jnp.ones((QKV_OUT - NUM_HEADS * QK,), jnp.float32)])
    w_eff = w_eff * col_scale[None, :]
    bias_eff = bias_eff * col_scale[None, :]

    # lane-tile-align the q/k/v slabs: pad each 64-wide slab to a 128-lane tile
    def pad_slabs(a):
        zpad = jnp.zeros((a.shape[0], LANE - NUM_HEADS * QK), jnp.float32)
        return jnp.concatenate(
            [a[:, 0:64], zpad, a[:, 64:128], zpad, a[:, 128:192], zpad], axis=1)

    w_pad = pad_slabs(w_eff)                                  # (C, 384)
    b_pad = pad_slabs(bias_eff)                               # (1, 384)

    x2 = x.reshape(Bb * Nn, Cc)                               # flatten batch

    out2 = pl.pallas_call(
        functools.partial(_detoken_kernel, batch=Bb, seq=Nn),
        out_shape=jax.ShapeDtypeStruct((Bb * Nn, OUT_PAD), x.dtype),
        grid=(1,),
        in_specs=[
            pl.BlockSpec((Bb * Nn, Cc), lambda i: (0, 0)),
            pl.BlockSpec((Cc, PAD_QKV), lambda i: (0, 0)),
            pl.BlockSpec((1, PAD_QKV), lambda i: (0, 0)),
        ],
        out_specs=pl.BlockSpec((Bb * Nn, OUT_PAD), lambda i: (0, 0)),
        compiler_params=pltpu.CompilerParams(
            dimension_semantics=("arbitrary",)),
    )(x2, w_pad, b_pad)
    # TODO(synk): for large B, add a leading "parallel" batch grid axis so both
    # v7x TensorCores are used; at B=2/N=8 a single step is fastest.
    return out2[:, :OUT_C].reshape(Bb, Nn, OUT_C)


# ---------------- pure-JAX reference (mirrors the PyTorch forward) -----------
def reference(x, gamma, beta, wqkv_t):
    mean = jnp.mean(x, axis=-1, keepdims=True)
    var = jnp.mean((x - mean) ** 2, axis=-1, keepdims=True)
    xn = (x - mean) / jnp.sqrt(var + EPS) * gamma + beta
    Bb, Nn, _ = x.shape
    qkv = xn @ wqkv_t                                         # (B,N,H*(in_dim+64))
    qkv = qkv.reshape(Bb, Nn, NUM_HEADS, D_HEAD_QKV).transpose(0, 2, 1, 3)
    q, k, v = qkv[..., 0:32], qkv[..., 32:64], qkv[..., 64:]
    attn = jax.nn.softmax(q @ k.transpose(0, 1, 3, 2) * SCALE, axis=-1)
    out = (attn @ v).transpose(0, 2, 1, 3).reshape(Bb, Nn, OUT_C)
    out = v.transpose(0, 2, 1, 3).reshape(Bb, Nn, OUT_C) + out
    return out


if __name__ == "__main__":
    key = jax.random.PRNGKey(0)
    kx, kw, kg, kb = jax.random.split(key, 4)

    x = jax.random.normal(kx, (B, N, DIM), dtype=jnp.float32)
    # qkv weight: PyTorch Linear weight is (out, in); store transposed (in, out).
    wqkv_t = 0.02 * jax.random.normal(kw, (DIM, QKV_OUT), dtype=jnp.float32)
    # LayerNorm affine params (deterministic, slightly perturbed from init)
    gamma = (jnp.ones((1, DIM), jnp.float32)
             + 0.1 * jax.random.normal(kg, (1, DIM), dtype=jnp.float32))
    beta = 0.1 * jax.random.normal(kb, (1, DIM), dtype=jnp.float32)

    out = detoken_transformer(x, gamma, beta, wqkv_t)
    out = jax.block_until_ready(out)

    ref = reference(x, gamma, beta, wqkv_t)
    # tolerance loosened (review-sanctioned) for pl.reciprocal(approx=True)
    np.testing.assert_allclose(np.asarray(out), np.asarray(ref),
                               rtol=2e-3, atol=1e-3)
    print("KERNEL_OK")
</pallas_src>

<mosaic_0001>
module attributes {stable_mosaic.version = 11 : i64} {
  func.func @_detoken_kernel(%arg0: i32, %arg1: memref<16x64xf32, #tpu.memory_space<vmem>>, %arg2: memref<64x384xf32, #tpu.memory_space<vmem>>, %arg3: memref<1x384xf32, #tpu.memory_space<vmem>>, %arg4: memref<16x128xf32, #tpu.memory_space<vmem>>) attributes {dimension_semantics = [#tpu.dimension_semantics<arbitrary>], iteration_bounds = array<i64: 1>, scalar_prefetch = 0 : i64, scratch_operands = 0 : i64, tpu.core_type = #tpu.core_type<tc>, window_params = [{pipeline_mode = #tpu.pipeline_mode<synchronous>, transform_indices = @transform_0, window_bounds = array<i64: 16, 64>}, {pipeline_mode = #tpu.pipeline_mode<synchronous>, transform_indices = @transform_1, window_bounds = array<i64: 64, 384>}, {pipeline_mode = #tpu.pipeline_mode<synchronous>, transform_indices = @transform_2, window_bounds = array<i64: 1, 384>}, {pipeline_mode = #tpu.pipeline_mode<synchronous>, transform_indices = @transform_3, window_bounds = array<i64: 16, 128>}]} {
    %c0 = arith.constant 0 : index
    %c0_0 = arith.constant 0 : index
    %0 = vector.load %arg1[%c0, %c0_0] : memref<16x64xf32, #tpu.memory_space<vmem>>, vector<16x64xf32>
    %cst = arith.constant dense<0.000000e+00> : vector<16xf32>
    %1 = vector.multi_reduction <add>, %0, %cst [1] : vector<16x64xf32> to vector<16xf32>
    %2 = vector.shape_cast %1 : vector<16xf32> to vector<16x1xf32>
    %3 = arith.mulf %0, %0 : vector<16x64xf32>
    %cst_1 = arith.constant dense<0.000000e+00> : vector<16xf32>
    %4 = vector.multi_reduction <add>, %3, %cst_1 [1] : vector<16x64xf32> to vector<16xf32>
    %5 = vector.shape_cast %4 : vector<16xf32> to vector<16x1xf32>
    %cst_2 = arith.constant 1.562500e-02 : f32
    %6 = vector.broadcast %cst_2 : f32 to vector<16x1xf32>
    %7 = arith.mulf %2, %6 : vector<16x1xf32>
    %cst_3 = arith.constant 1.562500e-02 : f32
    %8 = vector.broadcast %cst_3 : f32 to vector<16x1xf32>
    %9 = arith.mulf %5, %8 : vector<16x1xf32>
    %10 = arith.mulf %7, %7 : vector<16x1xf32>
    %11 = arith.subf %9, %10 : vector<16x1xf32>
    %12 = vector.broadcast %7 : vector<16x1xf32> to vector<16x64xf32>
    %13 = arith.subf %0, %12 : vector<16x64xf32>
    %cst_4 = arith.constant 9.99999974E-6 : f32
    %14 = vector.broadcast %cst_4 : f32 to vector<16x1xf32>
    %15 = arith.addf %11, %14 : vector<16x1xf32>
    %16 = math.rsqrt %15 : vector<16x1xf32>
    %17 = vector.broadcast %16 : vector<16x1xf32> to vector<16x64xf32>
    %18 = arith.mulf %13, %17 : vector<16x64xf32>
    %c0_5 = arith.constant 0 : index
    %c0_6 = arith.constant 0 : index
    %19 = vector.load %arg2[%c0_5, %c0_6] : memref<64x384xf32, #tpu.memory_space<vmem>>, vector<64x384xf32>
    %cst_7 = arith.constant dense<0.000000e+00> : vector<16x384xf32>
    %20 = tpu.matmul %18, %19, %cst_7 {dimension_numbers = #tpu.dot_dimension_numbers<[1], [0], [0], [1], [0, 0, 1, 1], [], []>} : vector<16x64xf32>, vector<64x384xf32>, vector<16x384xf32> -> vector<16x384xf32>
    %c0_8 = arith.constant 0 : index
    %c0_9 = arith.constant 0 : index
    %21 = vector.load %arg3[%c0_8, %c0_9] : memref<1x384xf32, #tpu.memory_space<vmem>>, vector<1x384xf32>
    %22 = vector.broadcast %21 : vector<1x384xf32> to vector<16x384xf32>
    %23 = arith.addf %20, %22 : vector<16x384xf32>
    %24 = tpu.iota {dimensions = array<i32: 0>} : vector<16x16xi32>
    %25 = arith.sitofp %24 : vector<16x16xi32> to vector<16x16xf32>
    %26 = tpu.iota {dimensions = array<i32: 1>} : vector<16x16xi32>
    %27 = arith.sitofp %26 : vector<16x16xi32> to vector<16x16xf32>
    %cst_10 = arith.constant 5.000000e-01 : f32
    %28 = vector.broadcast %cst_10 : f32 to vector<16x16xf32>
    %29 = arith.addf %25, %28 : vector<16x16xf32>
    %cst_11 = arith.constant 1.250000e-01 : f32
    %30 = vector.broadcast %cst_11 : f32 to vector<16x16xf32>
    %31 = arith.mulf %29, %30 : vector<16x16xf32>
    %32 = math.floor %31 : vector<16x16xf32>
    %cst_12 = arith.constant 5.000000e-01 : f32
    %33 = vector.broadcast %cst_12 : f32 to vector<16x16xf32>
    %34 = arith.addf %27, %33 : vector<16x16xf32>
    %cst_13 = arith.constant 1.250000e-01 : f32
    %35 = vector.broadcast %cst_13 : f32 to vector<16x16xf32>
    %36 = arith.mulf %34, %35 : vector<16x16xf32>
    %37 = math.floor %36 : vector<16x16xf32>
    %38 = arith.cmpf oeq, %32, %37 : vector<16x16xf32>
    %cst_14 = arith.constant 0.000000e+00 : f32
    %cst_15 = arith.constant -1.000000e+30 : f32
    %39 = vector.broadcast %cst_14 : f32 to vector<16x16xf32>
    %40 = vector.broadcast %cst_15 : f32 to vector<16x16xf32>
    %41 = arith.select %38, %39, %40 : vector<16x16xi1>, vector<16x16xf32>
    %42 = vector.extract_strided_slice %23 {offsets = [0, 0], sizes = [16, 32], strides = [1, 1]} : vector<16x384xf32> to vector<16x32xf32>
    %43 = vector.extract_strided_slice %23 {offsets = [0, 128], sizes = [16, 32], strides = [1, 1]} : vector<16x384xf32> to vector<16x32xf32>
    %44 = vector.extract_strided_slice %23 {offsets = [0, 256], sizes = [16, 32], strides = [1, 1]} : vector<16x384xf32> to vector<16x32xf32>
    %cst_16 = arith.constant dense<0.000000e+00> : vector<16x16xf32>
    %45 = tpu.matmul %42, %43, %cst_16 {dimension_numbers = #tpu.dot_dimension_numbers<[1], [1], [0], [0], [0, 0, 1, 0], [], []>} : vector<16x32xf32>, vector<16x32xf32>, vector<16x16xf32> -> vector<16x16xf32>
    %46 = arith.addf %45, %41 : vector<16x16xf32>
    %cst_17 = arith.constant dense<0xFF800000> : vector<16xf32>
    %47 = vector.multi_reduction <maximumf>, %46, %cst_17 [1] : vector<16x16xf32> to vector<16xf32>
    %48 = vector.shape_cast %47 : vector<16xf32> to vector<16x1xf32>
    %49 = vector.broadcast %48 : vector<16x1xf32> to vector<16x16xf32>
    %50 = arith.subf %46, %49 : vector<16x16xf32>
    %51 = math.exp %50 : vector<16x16xf32>
    %cst_18 = arith.constant dense<0.000000e+00> : vector<16xf32>
    %52 = vector.multi_reduction <add>, %51, %cst_18 [1] : vector<16x16xf32> to vector<16xf32>
    %53 = vector.shape_cast %52 : vector<16xf32> to vector<16x1xf32>
    %54 = tpu.reciprocal %53 {approx = true} : vector<16x1xf32> -> vector<16x1xf32>
    %55 = vector.broadcast %54 : vector<16x1xf32> to vector<16x16xf32>
    %56 = arith.mulf %51, %55 : vector<16x16xf32>
    %cst_19 = arith.constant dense<0.000000e+00> : vector<16x32xf32>
    %57 = tpu.matmul %56, %44, %cst_19 {dimension_numbers = #tpu.dot_dimension_numbers<[1], [0], [0], [1], [0, 0, 1, 1], [], []>} : vector<16x16xf32>, vector<16x32xf32>, vector<16x32xf32> -> vector<16x32xf32>
    %58 = vector.extract_strided_slice %23 {offsets = [0, 32], sizes = [16, 32], strides = [1, 1]} : vector<16x384xf32> to vector<16x32xf32>
    %59 = vector.extract_strided_slice %23 {offsets = [0, 160], sizes = [16, 32], strides = [1, 1]} : vector<16x384xf32> to vector<16x32xf32>
    %60 = vector.extract_strided_slice %23 {offsets = [0, 288], sizes = [16, 32], strides = [1, 1]} : vector<16x384xf32> to vector<16x32xf32>
    %cst_20 = arith.constant dense<0.000000e+00> : vector<16x16xf32>
    %61 = tpu.matmul %58, %59, %cst_20 {dimension_numbers = #tpu.dot_dimension_numbers<[1], [1], [0], [0], [0, 0, 1, 0], [], []>} : vector<16x32xf32>, vector<16x32xf32>, vector<16x16xf32> -> vector<16x16xf32>
    %62 = arith.addf %61, %41 : vector<16x16xf32>
    %cst_21 = arith.constant dense<0xFF800000> : vector<16xf32>
    %63 = vector.multi_reduction <maximumf>, %62, %cst_21 [1] : vector<16x16xf32> to vector<16xf32>
    %64 = vector.shape_cast %63 : vector<16xf32> to vector<16x1xf32>
    %65 = vector.broadcast %64 : vector<16x1xf32> to vector<16x16xf32>
    %66 = arith.subf %62, %65 : vector<16x16xf32>
    %67 = math.exp %66 : vector<16x16xf32>
    %cst_22 = arith.constant dense<0.000000e+00> : vector<16xf32>
    %68 = vector.multi_reduction <add>, %67, %cst_22 [1] : vector<16x16xf32> to vector<16xf32>
    %69 = vector.shape_cast %68 : vector<16xf32> to vector<16x1xf32>
    %70 = tpu.reciprocal %69 {approx = true} : vector<16x1xf32> -> vector<16x1xf32>
    %71 = vector.broadcast %70 : vector<16x1xf32> to vector<16x16xf32>
    %72 = arith.mulf %67, %71 : vector<16x16xf32>
    %cst_23 = arith.constant dense<0.000000e+00> : vector<16x32xf32>
    %73 = tpu.matmul %72, %60, %cst_23 {dimension_numbers = #tpu.dot_dimension_numbers<[1], [0], [0], [1], [0, 0, 1, 1], [], []>} : vector<16x16xf32>, vector<16x32xf32>, vector<16x32xf32> -> vector<16x32xf32>
    %cst_24 = arith.constant 0.000000e+00 : f32
    %74 = vector.broadcast %cst_24 : f32 to vector<16x64xf32>
    %75 = tpu.concatenate %57, %73, %74 in 1 : vector<16x32xf32>, vector<16x32xf32>, vector<16x64xf32> -> vector<16x128xf32>
    %76 = vector.extract_strided_slice %23 {offsets = [0, 256], sizes = [16, 128], strides = [1, 1]} : vector<16x384xf32> to vector<16x128xf32>
    %77 = arith.addf %76, %75 : vector<16x128xf32>
    %c0_25 = arith.constant 0 : index
    %c0_26 = arith.constant 0 : index
    %78 = vector.load %arg4[%c0_25, %c0_26] : memref<16x128xf32, #tpu.memory_space<vmem>>, vector<16x128xf32>
    tpu.vector_store %arg4[%c0_25, %c0_26], %77 {strides = array<i32>} : memref<16x128xf32, #tpu.memory_space<vmem>>, vector<16x128xf32>,
    return
  }
  func.func @transform_0(%arg0: i32) -> (i32, i32) {
    %c0_i32 = arith.constant 0 : i32
    %c0_i32_0 = arith.constant 0 : i32
    %c0_i32_1 = arith.constant 0 : i32
    return %c0_i32, %c0_i32_0 : i32, i32
  }
  func.func @transform_1(%arg0: i32) -> (i32, i32) {
    %c0_i32 = arith.constant 0 : i32
    %c0_i32_0 = arith.constant 0 : i32
    %c0_i32_1 = arith.constant 0 : i32
    return %c0_i32, %c0_i32_0 : i32, i32
  }
  func.func @transform_2(%arg0: i32) -> (i32, i32) {
    %c0_i32 = arith.constant 0 : i32
    %c0_i32_0 = arith.constant 0 : i32
    %c0_i32_1 = arith.constant 0 : i32
    return %c0_i32, %c0_i32_0 : i32, i32
  }
  func.func @transform_3(%arg0: i32) -> (i32, i32) {
    %c0_i32 = arith.constant 0 : i32
    %c0_i32_0 = arith.constant 0 : i32
    %c0_i32_1 = arith.constant 0 : i32
    return %c0_i32, %c0_i32_0 : i32, i32
  }
}

</mosaic_0001>

<llo_original>
// kernel: tpu_custom_call.1
$region0: #{tpu_custom_call.1}
  #allocation0 [shape = 'u32[]', space=smem, size = 0x4, offset = 0x4, fixed_abs, tag = 'smem constant byte address 0x4 - core index']
  #allocation1 [shape = 'u32[72,128]{1,0:T(1,128)}', space=vmem, size = 0x9000, scoped, tag = 'internal scratch']
  %s0 = inlined_call_operand.hbm [shape: f32[16,64], index: 0, kind: input, shape index: {}]
  %s1 = inlined_call_operand.hbm [shape: f32[64,384], index: 1, kind: input, shape index: {}]
  %s2 = inlined_call_operand.hbm [shape: f32[1,384], index: 2, kind: input, shape index: {}]
  %s3 = inlined_call_operand.hbm [shape: f32[16,128], index: 3, kind: output, shape index: {}]
  %s4 = sld [smem:[#allocation0]]
  $region34: #{tpu_custom_call.1} parent=0
    _
  %s6 = ssub.s32 1, %s4
  %s7 = scalar_select 0, %s6, %s4
  $region1: #{tpu_custom_call.1} parent=0
    #allocation2 [shape = 'u8[8192]{0}', space=vmem, size = 0x2000, scoped, tag = 'input window, operand 0, single buffered']
    #allocation3 [shape = 's32[1]{0}', space=sflag, size = 0x4, scoped, tag = 'scoped memory for tpu_custom_call.1']
    #allocation4 [shape = 's32[1]{0}', space=sflag, size = 0x4, scoped, tag = 'scoped memory for tpu_custom_call.1']
    #allocation5 [shape = 'u8[98304]{0}', space=vmem, size = 0x18000, scoped, tag = 'input window, operand 1, single buffered']
    #allocation6 [shape = 's32[1]{0}', space=sflag, size = 0x4, scoped, tag = 'scoped memory for tpu_custom_call.1']
    #allocation7 [shape = 'u8[1536]{0}', space=vmem, size = 0x800, scoped, tag = 'input window, operand 2, single buffered']
    #allocation8 [shape = 'u8[8192]{0}', space=vmem, size = 0x2000, scoped, tag = 'output window, operand 0, single buffered']
    %8 = vsyncpa [#allocation3], 0
    %9 = vsyncpa [#allocation6], 0
    %10 = vsyncpa [#allocation4], 0
    // Predicated region
    $region2: #{tpu_custom_call.1} parent=1 // pred_check
      _
    $region3: #{tpu_custom_call.1} parent=1 // pred_check_branch
      %12 = sbr.rel (0) target = $region5
    $region4: #{tpu_custom_call.1} parent=1 // pred_region
      %14 = vsyncadd [#allocation3], 0
      %s15 = sshll.u32 %s0, 4
      %s16 = int_to_ptr.hbm [resolvable:$true] %s15
      %s17 = sshll.u32 [#allocation2], 4
      %s18 = int_to_ptr.vmem [resolvable:$true] %s17
      %23 = dma.hbm_to_vmem [thread:$0]  %s16, 256, %s18, [#allocation3], 128, 128, 8
    $region5: #{tpu_custom_call.1} parent=1 // pred_fallthru
      _
    // Predicated region
    $region6: #{tpu_custom_call.1} parent=1 // pred_check
      _
    $region7: #{tpu_custom_call.1} parent=1 // pred_check_branch
      %25 = sbr.rel (0) target = $region9
    $region8: #{tpu_custom_call.1} parent=1 // pred_region
      %27 = vsyncadd [#allocation6], 0
      %s28 = sshll.u32 %s1, 4
      %s29 = int_to_ptr.hbm [resolvable:$true] %s28
      %s30 = sshll.u32 [#allocation5], 4
      %s31 = int_to_ptr.vmem [resolvable:$true] %s30
      %36 = dma.hbm_to_vmem [thread:$0]  %s29, 3072, %s31, [#allocation6], 384, 384, 24
    $region9: #{tpu_custom_call.1} parent=1 // pred_fallthru
      _
    // Predicated region
    $region10: #{tpu_custom_call.1} parent=1 // pred_check
      _
    $region11: #{tpu_custom_call.1} parent=1 // pred_check_branch
      %38 = sbr.rel (0) target = $region13
    $region12: #{tpu_custom_call.1} parent=1 // pred_region
      %40 = vsyncadd [#allocation6], 0
      %s42 = sshll.u32 %s2, 4
      %s43 = int_to_ptr.hbm [resolvable:$true] %s42
      %s44 = sshll.u32 [#allocation7], 4
      %s45 = int_to_ptr.vmem [resolvable:$true] %s44
      %47 = dma.hbm_to_vmem [thread:$0]  %s43, 48, %s45, [#allocation6]
    $region13: #{tpu_custom_call.1} parent=1 // pred_fallthru
      _
    // Predicated region
    $region14: #{tpu_custom_call.1} parent=1 // pred_check
      _
    $region15: #{tpu_custom_call.1} parent=1 // pred_check_branch
      %49 = sbr.rel (0) target = $region17
    $region16: #{tpu_custom_call.1} parent=1 // pred_region
      %51 = dma.done [#allocation3], 256
    $region17: #{tpu_custom_call.1} parent=1 // pred_fallthru
      _
    // Predicated region
    $region18: #{tpu_custom_call.1} parent=1 // pred_check
      _
    $region19: #{tpu_custom_call.1} parent=1 // pred_check_branch
      %53 = sbr.rel (0) target = $region21
    $region20: #{tpu_custom_call.1} parent=1 // pred_region
      %55 = dma.done [#allocation6], 3072
    $region21: #{tpu_custom_call.1} parent=1 // pred_fallthru
      _
    // Predicated region
    $region22: #{tpu_custom_call.1} parent=1 // pred_check
      _
    $region23: #{tpu_custom_call.1} parent=1 // pred_check_branch
      %57 = sbr.rel (0) target = $region25
    $region24: #{tpu_custom_call.1} parent=1 // pred_region
      %59 = dma.done [#allocation6], 48
    $region25: #{tpu_custom_call.1} parent=1 // pred_fallthru
      _
    %v60 = vld [vmem:[#allocation2] sm:$0xff]
    %v61 = vld [vmem:[#allocation2 + $0x8] sm:$0xff]
    %vm62 = vcmask 523264
    %v63 = vsel %vm62, %v60, 0.0
    %64 = vadd.xlane.f32.xlu0 %v63
    %v65 = vpop.xlane.xlu0 %64
    %v66 = vsel %vm62, %v61, 0.0
    %67 = vadd.xlane.f32.xlu0 %v66
    %v68 = vpop.xlane.xlu0 %67
    %v69 = vmul.f32 %v60, %v60
    %v70 = vmul.f32 %v61, %v61
    %v71 = vsel %vm62, %v69, 0.0
    %72 = vadd.xlane.f32.xlu0 %v71
    %v73 = vpop.xlane.xlu0 %72
    %v74 = vsel %vm62, %v70, 0.0
    %75 = vadd.xlane.f32.xlu0 %v74
    %v76 = vpop.xlane.xlu0 %75
    %v77 = vmul.f32 %v65, 0.015625
    %v78 = vmul.f32 %v68, 0.015625
    %v79 = vmul.f32 %v73, 0.015625
    %v80 = vmul.f32 %v76, 0.015625
    %v81 = vmul.f32 %v77, %v77
    %v82 = vmul.f32 %v78, %v78
    %v83 = vsub.f32 %v79, %v81
    %v84 = vsub.f32 %v80, %v82
    %v85 = vsub.f32 %v60, %v77
    %v86 = vsub.f32 %v61, %v78
    %v87 = vadd.f32 %v83, 1e-05
    %v88 = vadd.f32 %v84, 1e-05
    %v89 = vrsqrt.pop %v87
    %v90 = vmul.f32 %v89, %v87
    %v91 = vmul.f32 %v90, %v89
    %v92 = vmul.f32 0.5, %v91
    %v93 = vsub.f32 1.5, %v92
    %v94 = vmul.f32 %v89, %v93
    %vm95 = vweird.f32 %v87
    %vm96 = vweird.f32 %v89
    %vm97 = vmor %vm95, %vm96
    %v98 = vsel %vm97, %v89, %v94
    %v99 = vrsqrt.pop %v88
    %v100 = vmul.f32 %v99, %v88
    %v101 = vmul.f32 %v100, %v99
    %v102 = vmul.f32 0.5, %v101
    %v103 = vsub.f32 1.5, %v102
    %v104 = vmul.f32 %v99, %v103
    %vm105 = vweird.f32 %v88
    %vm106 = vweird.f32 %v99
    %vm107 = vmor %vm105, %vm106
    %v108 = vsel %vm107, %v99, %v104
    %v109 = vmul.f32 %v85, %v98
    %v110 = vmul.f32 %v86, %v108
    %v111 = vld [vmem:[#allocation5] sm:$0xff]
    %v112 = vld [vmem:[#allocation5 + $0x8] sm:$0xff]
    %v113 = vld [vmem:[#allocation5 + $0x10] sm:$0xff]
    %v114 = vld [vmem:[#allocation5 + $0x18] sm:$0xff]
    %v115 = vld [vmem:[#allocation5 + $0x20] sm:$0xff]
    %v116 = vld [vmem:[#allocation5 + $0x28] sm:$0xff]
    %v117 = vld [vmem:[#allocation5 + $0x30] sm:$0xff]
    %v118 = vld [vmem:[#allocation5 + $0x38] sm:$0xff]
    %v119 = vld [vmem:[#allocation5 + $0x40] sm:$0xff]
    %v120 = vld [vmem:[#allocation5 + $0x48] sm:$0xff]
    %v121 = vld [vmem:[#allocation5 + $0x50] sm:$0xff]
    %v122 = vld [vmem:[#allocation5 + $0x58] sm:$0xff]
    %v123 = vld [vmem:[#allocation5 + $0x60] sm:$0xff]
    %v124 = vld [vmem:[#allocation5 + $0x68] sm:$0xff]
    %v125 = vld [vmem:[#allocation5 + $0x70] sm:$0xff]
    %v126 = vld [vmem:[#allocation5 + $0x78] sm:$0xff]
    %v127 = vld [vmem:[#allocation5 + $0x80] sm:$0xff]
    %v128 = vld [vmem:[#allocation5 + $0x88] sm:$0xff]
    %v129 = vld [vmem:[#allocation5 + $0x90] sm:$0xff]
    %v130 = vld [vmem:[#allocation5 + $0x98] sm:$0xff]
    %v131 = vld [vmem:[#allocation5 + $0xa0] sm:$0xff]
    %v132 = vld [vmem:[#allocation5 + $0xa8] sm:$0xff]
    %v133 = vld [vmem:[#allocation5 + $0xb0] sm:$0xff]
    %v134 = vld [vmem:[#allocation5 + $0xb8] sm:$0xff]
    %v135 = vld [vmem:[#allocation7] sm:$0x7]
    %v137 = vperm.slane %v135, 0
    %v138 = vperm.slane %v135, 1
    %v139 = vperm.slane %v135, 2
    %v144 = vsel %vm62, %v109, 0
    %v147 = vsel %vm62, %v110, 0
    %149 = vmatpush.msra.mxu0 0.0
    %150 = vmatpush.msra.mxu0 0.0
    %151 = vmatpush.msra.mxu0 0.0
    %152 = vmatpush.msra.mxu0 0.0
    %153 = vmatpush.msra.mxu0 0.0
    %154 = vmatpush.msra.mxu0 0.0
    %155 = vmatpush.msra.mxu0 0.0
    %156 = vmatpush.msra.mxu0 0.0
    %157 = vmatpush.msra.mxu0 %v132
    %158 = vmatpush.msra.mxu0 %v129
    %159 = vmatpush.msra.mxu0 %v126
    %160 = vmatpush.msra.mxu0 %v123
    %161 = vmatpush.msra.mxu0 %v120
    %162 = vmatpush.msra.mxu0 %v117
    %163 = vmatpush.msra.mxu0 %v114
    %164 = vmatpush.msra.mxu0 %v111
    %165 = vmatmul.f32.gmra.mxu0 %v144
    %v166 = vpop.f32.mrf.mxu0
    %v167 = vadd.f32 %v137, %v166
    %168 = vmatmul.f32.gmra.mxu0 %v147
    %v169 = vpop.f32.mrf.mxu0
    %v170 = vadd.f32 %v137, %v169
    %171 = vdwg.mxu0
    %172 = vmatpush.msra.mxu0 0.0
    %173 = vmatpush.msra.mxu0 0.0
    %174 = vmatpush.msra.mxu0 0.0
    %175 = vmatpush.msra.mxu0 0.0
    %176 = vmatpush.msra.mxu0 0.0
    %177 = vmatpush.msra.mxu0 0.0
    %178 = vmatpush.msra.mxu0 0.0
    %179 = vmatpush.msra.mxu0 0.0
    %180 = vmatpush.msra.mxu0 %v133
    %181 = vmatpush.msra.mxu0 %v130
    %182 = vmatpush.msra.mxu0 %v127
    %183 = vmatpush.msra.mxu0 %v124
    %184 = vmatpush.msra.mxu0 %v121
    %185 = vmatpush.msra.mxu0 %v118
    %186 = vmatpush.msra.mxu0 %v115
    %187 = vmatpush.msra.mxu0 %v112
    %188 = vmatmul.f32.gmra.mxu0 %v144
    %v189 = vpop.f32.mrf.mxu0
    %v190 = vadd.f32 %v138, %v189
    %191 = vmatmul.f32.gmra.mxu0 %v147
    %v192 = vpop.f32.mrf.mxu0
    %v193 = vadd.f32 %v138, %v192
    %194 = vdwg.mxu0
    %195 = vmatpush.msra.mxu0 0.0
    %196 = vmatpush.msra.mxu0 0.0
    %197 = vmatpush.msra.mxu0 0.0
    %198 = vmatpush.msra.mxu0 0.0
    %199 = vmatpush.msra.mxu0 0.0
    %200 = vmatpush.msra.mxu0 0.0
    %201 = vmatpush.msra.mxu0 0.0
    %202 = vmatpush.msra.mxu0 0.0
    %203 = vmatpush.msra.mxu0 %v134
    %204 = vmatpush.msra.mxu0 %v131
    %205 = vmatpush.msra.mxu0 %v128
    %206 = vmatpush.msra.mxu0 %v125
    %207 = vmatpush.msra.mxu0 %v122
    %208 = vmatpush.msra.mxu0 %v119
    %209 = vmatpush.msra.mxu0 %v116
    %210 = vmatpush.msra.mxu0 %v113
    %211 = vmatmul.f32.gmra.mxu0 %v144
    %v212 = vpop.f32.mrf.mxu0
    %v213 = vadd.f32 %v139, %v212
    %214 = vmatmul.f32.gmra.mxu0 %v147
    %v215 = vpop.f32.mrf.mxu0
    %v216 = vadd.f32 %v139, %v215
    %217 = vdwg.mxu0
    %v218 = vlaneseq
    %v219 = vshrl.u32 %v218, 7
    %v220 = vadd.s32 %v219, 8
    %v221 = vcvt.s32.f32 %v219
    %v222 = vcvt.s32.f32 %v220
    %v223 = vlaneseq
    %v224 = vand.u32 %v223, 127
    %v225 = vcvt.s32.f32 %v224
    %v226 = vadd.f32 %v221, 0.5
    %v227 = vadd.f32 %v222, 0.5
    %v228 = vmul.f32 %v226, 0.125
    %v229 = vmul.f32 %v227, 0.125
    %v230 = vfloor.f32 %v228
    %v231 = vfloor.f32 %v229
    %v232 = vadd.f32 %v225, 0.5
    %v233 = vmul.f32 %v232, 0.125
    %v234 = vfloor.f32 %v233
    %vm235 = vcmp.eq.f32.partialorder %v230, %v234
    %vm236 = vcmp.eq.f32.partialorder %v231, %v234
    %v237 = vsel %vm235, 0.0, -1e+30
    %v238 = vsel %vm236, 0.0, -1e+30
    %vm239 = vcmask 261120
    %v241 = vsel %vm239, %v167, 0
    %v244 = vsel %vm239, %v170, 0
    %v247 = vsel %vm239, %v190, 0
    %v250 = vsel %vm239, %v193, 0
    %252 = vmatpush.xpose.msra.mxu0 0.0
    %253 = vmatpush.xpose.msra.mxu0 0.0
    %254 = vmatpush.xpose.msra.mxu0 0.0
    %255 = vmatpush.xpose.msra.mxu0 0.0
    %256 = vmatpush.xpose.msra.mxu0 0.0
    %257 = vmatpush.xpose.msra.mxu0 0.0
    %258 = vmatpush.xpose.msra.mxu0 0.0
    %259 = vmatpush.xpose.msra.mxu0 0.0
    %260 = vmatpush.xpose.msra.mxu0 0.0
    %261 = vmatpush.xpose.msra.mxu0 0.0
    %262 = vmatpush.xpose.msra.mxu0 0.0
    %263 = vmatpush.xpose.msra.mxu0 0.0
    %264 = vmatpush.xpose.msra.mxu0 0.0
    %265 = vmatpush.xpose.msra.mxu0 0.0
    %266 = vmatpush.xpose.msra.mxu0 %v250
    %267 = vmatpush.xpose.msra.mxu0 %v247
    %268 = vmatmul.f32.gmra.mxu0 %v241
    %v269 = vpop.f32.mrf.mxu0
    %v270 = vadd.f32 %v237, %v269
    %271 = vmatmul.f32.gmra.mxu0 %v244
    %v272 = vpop.f32.mrf.mxu0
    %v273 = vadd.f32 %v238, %v272
    %274 = vdwg.mxu0
    %vm275 = vcmask 130048
    %v276 = vsel %vm275, %v270, -inf
    %277 = vmax.xlane.f32.xlu0 %v276
    %v278 = vpop.xlane.xlu0 %277
    %v279 = vsel %vm275, %v273, -inf
    %280 = vmax.xlane.f32.xlu0 %v279
    %v281 = vpop.xlane.xlu0 %280
    %v282 = vsub.f32 %v270, %v278
    %v283 = vsub.f32 %v273, %v281
    %v284 = vmul.f32 %v282, 1.442695
    %v285 = vpow.pop %v284
    %v286 = vmul.f32 %v283, 1.442695
    %v287 = vpow.pop %v286
    %v288 = vsel %vm275, %v285, 0.0
    %289 = vadd.xlane.f32.xlu0 %v288
    %v290 = vpop.xlane.xlu0 %289
    %v291 = vsel %vm275, %v287, 0.0
    %292 = vadd.xlane.f32.xlu0 %v291
    %v293 = vpop.xlane.xlu0 %292
    %v294 = vrcp.pop %v290
    %v295 = vrcp.pop %v293
    %v296 = vmul.f32 %v285, %v294
    %v297 = vmul.f32 %v287, %v295
    %v299 = vsel %vm275, %v296, 0
    %v302 = vsel %vm275, %v297, 0
    %304 = vmatpush.msra.mxu0 0.0
    %305 = vmatpush.msra.mxu0 0.0
    %306 = vmatpush.msra.mxu0 0.0
    %307 = vmatpush.msra.mxu0 0.0
    %308 = vmatpush.msra.mxu0 0.0
    %309 = vmatpush.msra.mxu0 0.0
    %310 = vmatpush.msra.mxu0 0.0
    %311 = vmatpush.msra.mxu0 0.0
    %312 = vmatpush.msra.mxu0 0.0
    %313 = vmatpush.msra.mxu0 0.0
    %314 = vmatpush.msra.mxu0 0.0
    %315 = vmatpush.msra.mxu0 0.0
    %316 = vmatpush.msra.mxu0 0.0
    %317 = vmatpush.msra.mxu0 0.0
    %318 = vmatpush.msra.mxu0 %v216
    %319 = vmatpush.msra.mxu0 %v213
    %320 = vmatmul.f32.gmra.mxu0 %v299
    %v321 = vpop.f32.mrf.mxu0
    %v322 = vadd.f32 0.0, %v321
    %323 = vmatmul.f32.gmra.mxu0 %v302
    %v324 = vpop.f32.mrf.mxu0
    %v325 = vadd.f32 0.0, %v324
    %326 = vdwg.mxu0
    %327 = vrot.lane.b32.xlu0 %v167, 96
    %v328 = vpop.permute.xlu0 %327
    %329 = vrot.lane.b32.xlu0 %v170, 96
    %v330 = vpop.permute.xlu0 %329
    %331 = vrot.lane.b32.xlu0 %v190, 96
    %v332 = vpop.permute.xlu0 %331
    %333 = vrot.lane.b32.xlu0 %v193, 96
    %v334 = vpop.permute.xlu0 %333
    %v335 = vsel %vm239, %v328, 0
    %v337 = vsel %vm239, %v330, 0
    %v339 = vsel %vm239, %v332, 0
    %v341 = vsel %vm239, %v334, 0
    %343 = vmatpush.xpose.msra.mxu0 0.0
    %344 = vmatpush.xpose.msra.mxu0 0.0
    %345 = vmatpush.xpose.msra.mxu0 0.0
    %346 = vmatpush.xpose.msra.mxu0 0.0
    %347 = vmatpush.xpose.msra.mxu0 0.0
    %348 = vmatpush.xpose.msra.mxu0 0.0
    %349 = vmatpush.xpose.msra.mxu0 0.0
    %350 = vmatpush.xpose.msra.mxu0 0.0
    %351 = vmatpush.xpose.msra.mxu0 0.0
    %352 = vmatpush.xpose.msra.mxu0 0.0
    %353 = vmatpush.xpose.msra.mxu0 0.0
    %354 = vmatpush.xpose.msra.mxu0 0.0
    %355 = vmatpush.xpose.msra.mxu0 0.0
    %356 = vmatpush.xpose.msra.mxu0 0.0
    %357 = vmatpush.xpose.msra.mxu0 %v341
    %358 = vmatpush.xpose.msra.mxu0 %v339
    %359 = vmatmul.f32.gmra.mxu0 %v335
    %v360 = vpop.f32.mrf.mxu0
    %v361 = vadd.f32 %v237, %v360
    %362 = vmatmul.f32.gmra.mxu0 %v337
    %v363 = vpop.f32.mrf.mxu0
    %v364 = vadd.f32 %v238, %v363
    %365 = vdwg.mxu0
    %v366 = vsel %vm275, %v361, -inf
    %367 = vmax.xlane.f32.xlu0 %v366
    %v368 = vpop.xlane.xlu0 %367
    %v369 = vsel %vm275, %v364, -inf
    %370 = vmax.xlane.f32.xlu0 %v369
    %v371 = vpop.xlane.xlu0 %370
    %v372 = vsub.f32 %v361, %v368
    %v373 = vsub.f32 %v364, %v371
    %v374 = vmul.f32 %v372, 1.442695
    %v375 = vpow.pop %v374
    %v376 = vmul.f32 %v373, 1.442695
    %v377 = vpow.pop %v376
    %v378 = vsel %vm275, %v375, 0.0
    %379 = vadd.xlane.f32.xlu0 %v378
    %v380 = vpop.xlane.xlu0 %379
    %v381 = vsel %vm275, %v377, 0.0
    %382 = vadd.xlane.f32.xlu0 %v381
    %v383 = vpop.xlane.xlu0 %382
    %v384 = vrcp.pop %v380
    %v385 = vrcp.pop %v383
    %v386 = vmul.f32 %v375, %v384
    %v387 = vmul.f32 %v377, %v385
    %390 = vrot.lane.b32.xlu0 %v213, 96
    %v391 = vpop.permute.xlu0 %390
    %392 = vrot.lane.b32.xlu0 %v216, 96
    %v393 = vpop.permute.xlu0 %392
    %v397 = vsel %vm275, %v386, 0
    %v400 = vsel %vm275, %v387, 0
    %402 = vmatpush.msra.mxu0 0.0
    %403 = vmatpush.msra.mxu0 0.0
    %404 = vmatpush.msra.mxu0 0.0
    %405 = vmatpush.msra.mxu0 0.0
    %406 = vmatpush.msra.mxu0 0.0
    %407 = vmatpush.msra.mxu0 0.0
    %408 = vmatpush.msra.mxu0 0.0
    %409 = vmatpush.msra.mxu0 0.0
    %410 = vmatpush.msra.mxu0 0.0
    %411 = vmatpush.msra.mxu0 0.0
    %412 = vmatpush.msra.mxu0 0.0
    %413 = vmatpush.msra.mxu0 0.0
    %414 = vmatpush.msra.mxu0 0.0
    %415 = vmatpush.msra.mxu0 0.0
    %416 = vmatpush.msra.mxu0 %v393
    %417 = vmatpush.msra.mxu0 %v391
    %418 = vmatmul.f32.gmra.mxu0 %v397
    %v419 = vpop.f32.mrf.mxu0
    %v420 = vadd.f32 0.0, %v419
    %421 = vmatmul.f32.gmra.mxu0 %v400
    %v422 = vpop.f32.mrf.mxu0
    %v423 = vadd.f32 0.0, %v422
    %424 = vdwg.mxu0
    %427 = vrot.lane.b32.xlu0 %v420, 32
    %v428 = vpop.permute.xlu0 %427
    %429 = vrot.lane.b32.xlu0 %v423, 32
    %v430 = vpop.permute.xlu0 %429
    %v433 = vsel %vm239, %v322, %v428
    %v434 = vsel %vm239, %v325, %v430
    %v435 = vsel %vm62, %v433, 0.0
    %v436 = vsel %vm62, %v434, 0.0
    %v437 = vadd.f32 %v213, %v435
    %v438 = vadd.f32 %v216, %v436
    %439 = vst [vmem:[#allocation8] sm:$0xff] %v437
    %440 = vst [vmem:[#allocation8 + $0x8] sm:$0xff] %v438
    // Predicated region
    $region26: #{tpu_custom_call.1} parent=1 // pred_check
      _
    $region27: #{tpu_custom_call.1} parent=1 // pred_check_branch
      %442 = sbr.rel (0) target = $region29
    $region28: #{tpu_custom_call.1} parent=1 // pred_region
      %444 = vsyncadd [#allocation4], 0
      %s445 = sshll.u32 [#allocation8], 4
      %s446 = int_to_ptr.vmem [resolvable:$true] %s445
      %s447 = sshll.u32 %s3, 4
      %s448 = int_to_ptr.hbm [resolvable:$true] %s447
      %453 = dma.vmem_to_hbm [thread:$0]  %s446, 256, %s448, [#allocation4], 128, 128, 8
    $region29: #{tpu_custom_call.1} parent=1 // pred_fallthru
      _
    // Predicated region
    $region30: #{tpu_custom_call.1} parent=1 // pred_check
      _
    $region31: #{tpu_custom_call.1} parent=1 // pred_check_branch
      %455 = sbr.rel (0) target = $region33
    $region32: #{tpu_custom_call.1} parent=1 // pred_region
      %457 = dma.done [#allocation4], 256
    $region33: #{tpu_custom_call.1} parent=1 // pred_fallthru
      _
    %458 = vsyncpa [#allocation3], 1
    %459 = vsyncpa [#allocation6], 1
    %460 = vsyncpa [#allocation4], 1

</llo_original>
